<compile_context>
chip_gen: v7x
topology: tpu7x:2x2x1
jax: 0.10.0
libtpu: 0.0.40
codegen_flags: <defaults>
</compile_context>

<pallas_src>
import math

import jax
import jax.numpy as jnp
from jax.experimental import pallas as pl
from jax.experimental.pallas import tpu as pltpu


def _round_up(x: int, m: int) -> int:
    return ((x + m - 1) // m) * m


def _pick_tile(dim: int, candidates) -> int:
    for c in candidates:
        if dim % c == 0:
            return c
    return dim  # dim is already a multiple of 128 by construction


def _rnn_hard_cell_kernel(xh_ref, w_ref, b_ref, out_ref, acc_ref):
    """Fused [x|h] @ W_cat (+ b, hardtanh) — tiled matmul, K-axis accumulation."""
    k = pl.program_id(2)

    @pl.when(k == 0)
    def _():
        acc_ref[...] = jnp.zeros_like(acc_ref)

    acc_ref[...] += jnp.dot(
        xh_ref[...], w_ref[...], preferred_element_type=jnp.float32
    )

    @pl.when(k == pl.num_programs(2) - 1)
    def _():
        y = acc_ref[...] + b_ref[...]          # (1, tn) bias broadcast over batch tile
        out_ref[...] = jnp.clip(y, -1.0, 1.0).astype(out_ref.dtype)


def prepare_params(w_ih, w_hh, b_ih, b_hh, weight_dtype=jnp.float32):
    """One-time parameter prep: transpose, fuse, pad, (optionally) downcast.

    w_ih: (n_hidden, n_input), w_hh: (n_hidden, n_hidden), b_*: (n_hidden,)
    Returns:
      w_cat: (Kp, Np)  with K = n_input + n_hidden padded to 128, N padded to 128
      bias:  (1, Np)   f32, b_ih + b_hh (zero-padded)
    """
    n_hidden, n_input = w_ih.shape
    K = n_input + n_hidden
    Kp = _round_up(K, 128)
    Np = _round_up(n_hidden, 128)

    w_cat = jnp.concatenate(
        [jnp.asarray(w_ih, jnp.float32).T, jnp.asarray(w_hh, jnp.float32).T], axis=0
    )                                                        # (K, n_hidden)
    w_cat = jnp.pad(w_cat, ((0, Kp - K), (0, Np - n_hidden))).astype(weight_dtype)

    bias = jnp.asarray(b_ih, jnp.float32) + jnp.asarray(b_hh, jnp.float32)
    bias = jnp.pad(bias, (0, Np - n_hidden)).reshape(1, Np)
    return w_cat, bias


@jax.jit
def rnn_hard_cell(x, h, w_cat, bias):
    """One RNNHardCell step.

    x: (B, n_input) f32, h: (B, n_hidden) f32
    w_cat, bias: from prepare_params
    returns (B, n_hidden) f32
    """
    B, n_input = x.shape
    n_hidden = h.shape[1]
    K = n_input + n_hidden
    Kp, Np = w_cat.shape

    # Tile selection (all static at trace time). Caps keep the double-buffered
    # working set ~1–2 MiB — safe on v5e/v6e/v7x VMEM alike.
    tb = min(128, _round_up(B, 8))
    tn = _pick_tile(Np, (256, 128))
    tk = _pick_tile(Kp, (512, 256, 128))
    Bp = _round_up(B, tb)

    # Activation prep: fuse x|h along K, pad, match streamed weight dtype.
    xh = jnp.concatenate(
        [jnp.asarray(x, jnp.float32), jnp.asarray(h, jnp.float32)], axis=1
    )
    xh = jnp.pad(xh, ((0, Bp - B), (0, Kp - K))).astype(w_cat.dtype)

    itemsize = jnp.dtype(w_cat.dtype).itemsize
    cost = pl.CostEstimate(
        flops=2 * Bp * Kp * Np,
        transcendentals=0,
        bytes_accessed=(Bp * Kp * itemsize + Kp * Np * itemsize
                        + Np * 4 + Bp * Np * 4),
    )

    out = pl.pallas_call(
        _rnn_hard_cell_kernel,
        out_shape=jax.ShapeDtypeStruct((Bp, Np), jnp.float32),
        grid_spec=pltpu.PrefetchScalarGridSpec(
            num_scalar_prefetch=0,
            grid=(Bp // tb, Np // tn, Kp // tk),
            in_specs=[
                pl.BlockSpec((tb, tk), lambda i, j, k: (i, k)),   # [x|h] tile
                pl.BlockSpec((tk, tn), lambda i, j, k: (k, j)),   # W_cat tile
                pl.BlockSpec((1, tn), lambda i, j, k: (0, j)),    # fused bias row
            ],
            out_specs=pl.BlockSpec((tb, tn), lambda i, j, k: (i, j)),
            scratch_shapes=[pltpu.VMEM((tb, tn), jnp.float32)],
        ),
        compiler_params=pltpu.CompilerParams(
            dimension_semantics=("parallel", "parallel", "arbitrary"),
        ),
        cost_estimate=cost,
    )(xh, w_cat, bias)

    return out[:B, :n_hidden]


def init_params(key, n_input, n_hidden):
    """Deterministic init matching PyTorch's _init_weights: U(-stdv, stdv)."""
    stdv = 1.0 / math.sqrt(n_hidden) if n_hidden > 0 else 0.0
    k1, k2, k3, k4 = jax.random.split(key, 4)
    w_ih = jax.random.uniform(k1, (n_hidden, n_input), jnp.float32, -stdv, stdv)
    b_ih = jax.random.uniform(k2, (n_hidden,), jnp.float32, -stdv, stdv)
    w_hh = jax.random.uniform(k3, (n_hidden, n_hidden), jnp.float32, -stdv, stdv)
    b_hh = jax.random.uniform(k4, (n_hidden,), jnp.float32, -stdv, stdv)
    return w_ih, b_ih, w_hh, b_hh


if __name__ == "__main__":
    key = jax.random.PRNGKey(0)
    kx, kh, kp = jax.random.split(key, 3)

    B, n_input, n_hidden = 8, 16, 32
    x = jax.random.normal(kx, (B, n_input), jnp.float32)
    h0 = jax.random.normal(kh, (B, n_hidden), jnp.float32)
    w_ih, b_ih, w_hh, b_hh = init_params(kp, n_input, n_hidden)

    # Pure-JAX reference.
    ref = jnp.clip(x @ w_ih.T + b_ih + h0 @ w_hh.T + b_hh, -1.0, 1.0)

    # f32 streamed-weight path: strict tolerance.
    w_cat32, bias32 = prepare_params(w_ih, w_hh, b_ih, b_hh, jnp.float32)
    y32 = jax.block_until_ready(rnn_hard_cell(x, h0, w_cat32, bias32))
    assert y32.shape == (B, n_hidden)
    assert jnp.allclose(y32, ref, atol=1e-5, rtol=1e-5), "f32 path mismatch vs reference"

    # bf16 streamed-weight path (weight-bandwidth optimization), f32 accumulation.
    w_cat16, bias16 = prepare_params(w_ih, w_hh, b_ih, b_hh, jnp.bfloat16)
    y16 = jax.block_until_ready(rnn_hard_cell(x, h0, w_cat16, bias16))
    assert y16.shape == (B, n_hidden)
    assert jnp.allclose(y16, ref, atol=5e-2, rtol=5e-2), "bf16 path mismatch vs reference"

    print("KERNEL_OK")
</pallas_src>

<mosaic_0001>
module attributes {stable_mosaic.version = 11 : i64} {
  func.func @_rnn_hard_cell_kernel(%arg0: i32, %arg1: i32, %arg2: i32, %arg3: memref<8x128xf32, #tpu.memory_space<vmem>>, %arg4: memref<128x128xf32, #tpu.memory_space<vmem>>, %arg5: memref<1x128xf32, #tpu.memory_space<vmem>>, %arg6: memref<8x128xf32, #tpu.memory_space<vmem>>, %arg7: memref<8x128xf32, #tpu.memory_space<vmem>>) attributes {dimension_semantics = [#tpu.dimension_semantics<parallel>, #tpu.dimension_semantics<parallel>, #tpu.dimension_semantics<arbitrary>], iteration_bounds = array<i64: 1, 1, 1>, scalar_prefetch = 0 : i64, scratch_operands = 1 : i64, tpu.core_type = #tpu.core_type<tc>, window_params = [{transform_indices = @transform_0, window_bounds = array<i64: 8, 128>}, {transform_indices = @transform_1, window_bounds = array<i64: 128, 128>}, {transform_indices = @transform_2, window_bounds = array<i64: 1, 128>}, {transform_indices = @transform_3, window_bounds = array<i64: 8, 128>}]} {
    %c0_i32 = arith.constant 0 : i32
    %0 = arith.cmpi eq, %arg2, %c0_i32 : i32
    %1 = arith.extui %0 : i1 to i32
    %c0_i32_0 = arith.constant 0 : i32
    %2 = arith.cmpi ne, %1, %c0_i32_0 : i32
    scf.if %2 {
      %cst_10 = arith.constant 0.000000e+00 : f32
      %12 = vector.broadcast %cst_10 : f32 to vector<8x128xf32>
      %c0_11 = arith.constant 0 : index
      %c0_12 = arith.constant 0 : index
      %13 = vector.load %arg7[%c0_11, %c0_12] : memref<8x128xf32, #tpu.memory_space<vmem>>, vector<8x128xf32>
      tpu.vector_store %arg7[%c0_11, %c0_12], %12 {strides = array<i32>} : memref<8x128xf32, #tpu.memory_space<vmem>>, vector<8x128xf32>,
    } else {
    }
    %c0 = arith.constant 0 : index
    %c0_1 = arith.constant 0 : index
    %3 = vector.load %arg7[%c0, %c0_1] : memref<8x128xf32, #tpu.memory_space<vmem>>, vector<8x128xf32>
    %c0_2 = arith.constant 0 : index
    %c0_3 = arith.constant 0 : index
    %4 = vector.load %arg3[%c0_2, %c0_3] : memref<8x128xf32, #tpu.memory_space<vmem>>, vector<8x128xf32>
    %c0_4 = arith.constant 0 : index
    %c0_5 = arith.constant 0 : index
    %5 = vector.load %arg4[%c0_4, %c0_5] : memref<128x128xf32, #tpu.memory_space<vmem>>, vector<128x128xf32>
    %cst = arith.constant dense<0.000000e+00> : vector<8x128xf32>
    %6 = tpu.matmul %4, %5, %cst {dimension_numbers = #tpu.dot_dimension_numbers<[1], [0], [0], [1], [0, 0, 1, 1], [], []>} : vector<8x128xf32>, vector<128x128xf32>, vector<8x128xf32> -> vector<8x128xf32>
    %7 = arith.addf %3, %6 : vector<8x128xf32>
    %c0_6 = arith.constant 0 : index
    %c0_7 = arith.constant 0 : index
    %8 = vector.load %arg7[%c0_6, %c0_7] : memref<8x128xf32, #tpu.memory_space<vmem>>, vector<8x128xf32>
    tpu.vector_store %arg7[%c0_6, %c0_7], %7 {strides = array<i32>} : memref<8x128xf32, #tpu.memory_space<vmem>>, vector<8x128xf32>,
    %c0_i32_8 = arith.constant 0 : i32
    %9 = arith.cmpi eq, %arg2, %c0_i32_8 : i32
    %10 = arith.extui %9 : i1 to i32
    %c0_i32_9 = arith.constant 0 : i32
    %11 = arith.cmpi ne, %10, %c0_i32_9 : i32
    scf.if %11 {
      %c0_10 = arith.constant 0 : index
      %c0_11 = arith.constant 0 : index
      %12 = vector.load %arg7[%c0_10, %c0_11] : memref<8x128xf32, #tpu.memory_space<vmem>>, vector<8x128xf32>
      %c0_12 = arith.constant 0 : index
      %c0_13 = arith.constant 0 : index
      %13 = vector.load %arg5[%c0_12, %c0_13] : memref<1x128xf32, #tpu.memory_space<vmem>>, vector<1x128xf32>
      %14 = vector.broadcast %13 : vector<1x128xf32> to vector<8x128xf32>
      %15 = arith.addf %12, %14 : vector<8x128xf32>
      %cst_14 = arith.constant -1.000000e+00 : f32
      %cst_15 = arith.constant 1.000000e+00 : f32
      %16 = vector.broadcast %cst_14 : f32 to vector<8x128xf32>
      %17 = arith.maximumf %16, %15 : vector<8x128xf32>
      %18 = vector.broadcast %cst_15 : f32 to vector<8x128xf32>
      %19 = arith.minimumf %18, %17 : vector<8x128xf32>
      %c0_16 = arith.constant 0 : index
      %c0_17 = arith.constant 0 : index
      %20 = vector.load %arg6[%c0_16, %c0_17] : memref<8x128xf32, #tpu.memory_space<vmem>>, vector<8x128xf32>
      tpu.vector_store %arg6[%c0_16, %c0_17], %19 {strides = array<i32>} : memref<8x128xf32, #tpu.memory_space<vmem>>, vector<8x128xf32>,
    } else {
    }
    return
  }
  func.func @transform_0(%arg0: i32, %arg1: i32, %arg2: i32) -> (i32, i32) {
    %c0_i32 = arith.constant 0 : i32
    return %arg0, %arg2 : i32, i32
  }
  func.func @transform_1(%arg0: i32, %arg1: i32, %arg2: i32) -> (i32, i32) {
    %c0_i32 = arith.constant 0 : i32
    return %arg2, %arg1 : i32, i32
  }
  func.func @transform_2(%arg0: i32, %arg1: i32, %arg2: i32) -> (i32, i32) {
    %c0_i32 = arith.constant 0 : i32
    %c0_i32_0 = arith.constant 0 : i32
    return %c0_i32, %arg1 : i32, i32
  }
  func.func @transform_3(%arg0: i32, %arg1: i32, %arg2: i32) -> (i32, i32) {
    %c0_i32 = arith.constant 0 : i32
    return %arg0, %arg1 : i32, i32
  }
}

</mosaic_0001>

<llo_original>
// kernel: rnn_hard_cell.1
$region0: #{rnn_hard_cell.1}
  #allocation0 [shape = 'u32[]', space=smem, size = 0x4, offset = 0x4, fixed_abs, tag = 'smem constant byte address 0x4 - core index']
  #allocation1 [shape = 'u32[144,128]{1,0:T(1,128)}', space=vmem, size = 0x12000, scoped, tag = 'internal scratch']
  #allocation2 [shape = 'f32[8,128]{1,0:T(8,128)}', space=vmem, size = 0x1000, scoped, tag = 'scratch operand']
  %s0 = inlined_call_operand.vmem [shape: f32[8,128], index: 0, kind: input, shape index: {}]
  %s1 = inlined_call_operand.hbm [shape: f32[128,128], index: 1, kind: input, shape index: {}]
  %s2 = inlined_call_operand.vmem [shape: f32[1,128], index: 2, kind: input, shape index: {}]
  %s3 = inlined_call_operand.hbm [shape: f32[8,128], index: 3, kind: output, shape index: {}]
  %s4 = sld [smem:[#allocation0]]
  $region34: #{rnn_hard_cell.1} parent=0
    _
  %s6 = ssub.s32 1, %s4
  %s7 = scalar_select 0, %s6, %s4
  $region1: #{rnn_hard_cell.1} parent=0
    #allocation3 [shape = 'u8[65536]{0}', space=vmem, size = 0x10000, scoped, tag = 'input window, operand 1, single buffered']
    #allocation4 [shape = 's32[1]{0}', space=sflag, size = 0x4, scoped, tag = 'scoped memory for rnn_hard_cell.1']
    #allocation5 [shape = 's32[1]{0}', space=sflag, size = 0x4, scoped, tag = 'scoped memory for rnn_hard_cell.1']
    #allocation6 [shape = 'u8[4096]{0}', space=vmem, size = 0x1000, scoped, tag = 'output window, operand 0, single buffered']
    %8 = vsyncpa [#allocation4], 0
    %9 = vsyncpa [#allocation5], 0
    // Predicated region
    $region2: #{rnn_hard_cell.1} parent=1 // pred_check
      _
    $region3: #{rnn_hard_cell.1} parent=1 // pred_check_branch
      %11 = sbr.rel (0) target = $region5
    $region4: #{rnn_hard_cell.1} parent=1 // pred_region
      _
    $region5: #{rnn_hard_cell.1} parent=1 // pred_fallthru
      _
    // Predicated region
    $region6: #{rnn_hard_cell.1} parent=1 // pred_check
      _
    $region7: #{rnn_hard_cell.1} parent=1 // pred_check_branch
      %13 = sbr.rel (0) target = $region9
    $region8: #{rnn_hard_cell.1} parent=1 // pred_region
      %s15 = ssub.s32 2048, 2048
      %16 = vsyncadd [#allocation4], %s15
      %s17 = sshll.u32 [#allocation3], 4
      %s18 = int_to_ptr.vmem [resolvable:$true] %s17
      %23 = dma.hbm_to_vmem [thread:$0]  %s1, 2048, %s18, [#allocation4], 128, 128, 8
    $region9: #{rnn_hard_cell.1} parent=1 // pred_fallthru
      _
    // Predicated region
    $region10: #{rnn_hard_cell.1} parent=1 // pred_check
      _
    $region11: #{rnn_hard_cell.1} parent=1 // pred_check_branch
      %25 = sbr.rel (0) target = $region13
    $region12: #{rnn_hard_cell.1} parent=1 // pred_region
      _
    $region13: #{rnn_hard_cell.1} parent=1 // pred_fallthru
      _
    // Predicated region
    $region14: #{rnn_hard_cell.1} parent=1 // pred_check
      _
    $region15: #{rnn_hard_cell.1} parent=1 // pred_check_branch
      %27 = sbr.rel (0) target = $region17
    $region16: #{rnn_hard_cell.1} parent=1 // pred_region
      %28 = dma.done [#allocation4], 2048
    $region17: #{rnn_hard_cell.1} parent=1 // pred_fallthru
      _
    %p29 = scmp.eq.s32.totalorder 0, 0
    // Predicated region
    $region18: #{rnn_hard_cell.1} parent=1 // pred_check
      %p30 = pneg %p29
    $region19: #{rnn_hard_cell.1} parent=1 // pred_check_branch
      %32 = sbr.rel (%p30) target = $region21
    $region20: #{rnn_hard_cell.1} parent=1 // pred_region
      %33 = vst [vmem:[#allocation2] sm:$0xff] 0.0
    $region21: #{rnn_hard_cell.1} parent=1 // pred_fallthru
      _
    %v34 = vld [vmem:[#allocation2] sm:$0xff]
    %v35 = vld [vmem:[%s0] sm:$0xff]
    %v36 = vld [vmem:[#allocation3] sm:$0xff]
    %v37 = vld [vmem:[#allocation3 + $0x8] sm:$0xff]
    %v38 = vld [vmem:[#allocation3 + $0x10] sm:$0xff]
    %v39 = vld [vmem:[#allocation3 + $0x18] sm:$0xff]
    %v40 = vld [vmem:[#allocation3 + $0x20] sm:$0xff]
    %v41 = vld [vmem:[#allocation3 + $0x28] sm:$0xff]
    %v42 = vld [vmem:[#allocation3 + $0x30] sm:$0xff]
    %v43 = vld [vmem:[#allocation3 + $0x38] sm:$0xff]
    %v44 = vld [vmem:[#allocation3 + $0x40] sm:$0xff]
    %v45 = vld [vmem:[#allocation3 + $0x48] sm:$0xff]
    %v46 = vld [vmem:[#allocation3 + $0x50] sm:$0xff]
    %v47 = vld [vmem:[#allocation3 + $0x58] sm:$0xff]
    %v48 = vld [vmem:[#allocation3 + $0x60] sm:$0xff]
    %v49 = vld [vmem:[#allocation3 + $0x68] sm:$0xff]
    %v50 = vld [vmem:[#allocation3 + $0x70] sm:$0xff]
    %v51 = vld [vmem:[#allocation3 + $0x78] sm:$0xff]
    %52 = vmatprep.subr.mxu0 0.0
    %53 = vmatpush1.msra.mxu0 %v36
    %54 = vmatprep.subr.mxu0 0.0
    %55 = vmatpush1.msra.mxu0 %v37
    %56 = vmatprep.subr.mxu0 0.0
    %57 = vmatpush1.msra.mxu0 %v38
    %58 = vmatprep.subr.mxu0 0.0
    %59 = vmatpush1.msra.mxu0 %v39
    %60 = vmatprep.subr.mxu0 0.0
    %61 = vmatpush1.msra.mxu0 %v40
    %62 = vmatprep.subr.mxu0 0.0
    %63 = vmatpush1.msra.mxu0 %v41
    %64 = vmatprep.subr.mxu0 0.0
    %65 = vmatpush1.msra.mxu0 %v42
    %66 = vmatprep.subr.mxu0 0.0
    %67 = vmatpush1.msra.mxu0 %v43
    %68 = vmatprep.subr.mxu0 0.0
    %69 = vmatpush1.msra.mxu0 %v44
    %70 = vmatprep.subr.mxu0 0.0
    %71 = vmatpush1.msra.mxu0 %v45
    %72 = vmatprep.subr.mxu0 0.0
    %73 = vmatpush1.msra.mxu0 %v46
    %74 = vmatprep.subr.mxu0 0.0
    %75 = vmatpush1.msra.mxu0 %v47
    %76 = vmatprep.subr.mxu0 0.0
    %77 = vmatpush1.msra.mxu0 %v48
    %78 = vmatprep.subr.mxu0 0.0
    %79 = vmatpush1.msra.mxu0 %v49
    %80 = vmatprep.subr.mxu0 0.0
    %81 = vmatpush1.msra.mxu0 %v50
    %82 = vmatprep.subr.mxu0 0.0
    %83 = vmatpush1.msra.mxu0 %v51
    %84 = vmatprep.subr.mxu0 0.0
    %85 = vmatpush1.msra.mxu0 0.0
    %86 = vmatprep.subr.mxu0 0.0
    %87 = vmatpush1.msra.mxu0 0.0
    %88 = vmatprep.subr.mxu0 0.0
    %89 = vmatpush1.msra.mxu0 0.0
    %90 = vmatprep.subr.mxu0 0.0
    %91 = vmatpush1.msra.mxu0 0.0
    %92 = vmatprep.subr.mxu0 0.0
    %93 = vmatpush1.msra.mxu0 0.0
    %94 = vmatprep.subr.mxu0 0.0
    %95 = vmatpush1.msra.mxu0 0.0
    %96 = vmatprep.subr.mxu0 0.0
    %97 = vmatpush1.msra.mxu0 0.0
    %98 = vmatprep.subr.mxu0 0.0
    %99 = vmatpush1.msra.mxu0 0.0
    %100 = vmatprep.subr.mxu0 0.0
    %101 = vmatpush1.msra.mxu0 0.0
    %102 = vmatprep.subr.mxu0 0.0
    %103 = vmatpush1.msra.mxu0 0.0
    %104 = vmatprep.subr.mxu0 0.0
    %105 = vmatpush1.msra.mxu0 0.0
    %106 = vmatprep.subr.mxu0 0.0
    %107 = vmatpush1.msra.mxu0 0.0
    %108 = vmatprep.subr.mxu0 0.0
    %109 = vmatpush1.msra.mxu0 0.0
    %110 = vmatprep.subr.mxu0 0.0
    %111 = vmatpush1.msra.mxu0 0.0
    %112 = vmatprep.subr.mxu0 0.0
    %113 = vmatpush1.msra.mxu0 0.0
    %114 = vmatprep.subr.mxu0 0.0
    %115 = vmatpush1.msra.mxu0 0.0
    %116 = vmatprep.mubr.f32.mxu0 0.0
    %117 = vmatmul.mubr.f32.gmra.mrb[0].mxu0 %v35
    %v118 = vpop.f32.mrb[0].mxu0
    %v119 = vadd.f32 0.0, %v118
    %v120 = vpop.f32.mrb[0].mxu0
    %121 = vdwg.mxu0
    %v122 = vadd.f32 %v34, %v119
    %123 = vst [vmem:[#allocation2] sm:$0xff] %v122
    // Predicated region
    $region22: #{rnn_hard_cell.1} parent=1 // pred_check
      %p124 = pneg %p29
    $region23: #{rnn_hard_cell.1} parent=1 // pred_check_branch
      %126 = sbr.rel (%p124) target = $region25
    $region24: #{rnn_hard_cell.1} parent=1 // pred_region
      %v127 = vld [vmem:[#allocation2] sm:$0xff]
      %v128 = vld [vmem:[%s2] sm:$0x1]
      %v130 = vlaneseq
      %v131 = vshrl.u32 %v130, 7
      %v132 = vsub.s32 0, %v131
      %v133 = vrot.slane %v128, %v132
      %v135 = vadd.f32 %v127, %v133
      %v136 = vmax.f32 %v135, -1.0
      %v137 = vmin.f32 %v136, 1.0
      %138 = vst [vmem:[#allocation6] sm:$0xff] %v137
    $region25: #{rnn_hard_cell.1} parent=1 // pred_fallthru
      _
    // Predicated region
    $region26: #{rnn_hard_cell.1} parent=1 // pred_check
      _
    $region27: #{rnn_hard_cell.1} parent=1 // pred_check_branch
      %140 = sbr.rel (0) target = $region29
    $region28: #{rnn_hard_cell.1} parent=1 // pred_region
      %s142 = ssub.s32 128, 128
      %143 = vsyncadd [#allocation5], %s142
      %s145 = sshll.u32 [#allocation6], 4
      %s146 = int_to_ptr.vmem [resolvable:$true] %s145
      %148 = dma.vmem_to_hbm [thread:$0]  %s146, 128, %s3, [#allocation5]
    $region29: #{rnn_hard_cell.1} parent=1 // pred_fallthru
      _
    // Predicated region
    $region30: #{rnn_hard_cell.1} parent=1 // pred_check
      _
    $region31: #{rnn_hard_cell.1} parent=1 // pred_check_branch
      %150 = sbr.rel (0) target = $region33
    $region32: #{rnn_hard_cell.1} parent=1 // pred_region
      %151 = dma.done [#allocation5], 128
    $region33: #{rnn_hard_cell.1} parent=1 // pred_fallthru
      _
    %152 = vsyncpa [#allocation4], 1
    %153 = vsyncpa [#allocation5], 1

</llo_original>
